<compile_context>
chip_gen: v5e
topology: v5e:2x2
jax: 0.10.0
libtpu: 0.0.40
codegen_flags: <defaults>
</compile_context>

<pallas_src>
import math
import functools

import jax
import jax.numpy as jnp
import numpy as np
from jax.experimental import pallas as pl
from jax.experimental.pallas import tpu as pltpu

_LANES = 128


# ----------------------------------------------------------------------------
# Kernels (pure 2D lane-dense tiles)
# ----------------------------------------------------------------------------
def _posenc_add_kernel(x_ref, pe_ref, o_ref):
    # Eval mode: dropout is identity -> plain elementwise add.
    o_ref[...] = x_ref[...] + pe_ref[...]


def _posenc_add_dropout_kernel(x_ref, pe_ref, u_ref, o_ref, *, p):
    # Train mode: inverted dropout fused with the add.
    y = x_ref[...] + pe_ref[...]
    keep = u_ref[...] >= jnp.float32(p)           # P(keep) = 1 - p
    scale = jnp.float32(1.0 / (1.0 - p))
    o_ref[...] = jnp.where(keep, y * scale, jnp.zeros_like(y))


# ----------------------------------------------------------------------------
# PE table (identical math to the PyTorch __init__)
# ----------------------------------------------------------------------------
def make_positional_encoding_table(max_seq_len: int, d_model: int) -> jnp.ndarray:
    position = jnp.arange(max_seq_len, dtype=jnp.float32)[:, None]          # (L, 1)
    div_term = jnp.exp(
        jnp.arange(0, d_model, 2, dtype=jnp.float32) * (-math.log(10000.0) / d_model)
    )                                                                        # (D/2,)
    angles = position * div_term                                             # (L, D/2)
    pe = jnp.zeros((max_seq_len, d_model), dtype=jnp.float32)
    pe = pe.at[:, 0::2].set(jnp.sin(angles))
    pe = pe.at[:, 1::2].set(jnp.cos(angles))
    return pe[:, None, :]                                                    # (L, 1, D)


def _round_up(n: int, m: int) -> int:
    return ((n + m - 1) // m) * m


# ----------------------------------------------------------------------------
# Wrapper
# ----------------------------------------------------------------------------
def positional_encoding_forward(x, pe, *, p=0.1, training=False, rng_key=None,
                                tile_rows=1024):
    """x: (S, B, D) float32;  pe: (max_seq_len, 1, D) float32."""
    S, B, D = x.shape
    total = S * B * D

    # pe[:S] broadcast over batch, then flattened identically to x.
    pe_full = jnp.broadcast_to(pe[:S], (S, B, D)).astype(x.dtype)

    # Lane-dense 2D layout: (rows, 128), rows padded to a multiple of the
    # (8-aligned) row tile so every block satisfies the (8, 128) constraint.
    rows = pl.cdiv(total, _LANES)
    rows8 = _round_up(rows, 8)
    tr = _round_up(min(int(tile_rows), rows8), 8)
    padded_rows = _round_up(rows8, tr)
    pad = padded_rows * _LANES - total

    x_flat = x.reshape(-1)
    pe_flat = pe_full.reshape(-1)
    if pad:
        x_flat = jnp.pad(x_flat, (0, pad))
        pe_flat = jnp.pad(pe_flat, (0, pad))
    x2 = x_flat.reshape(padded_rows, _LANES)
    pe2 = pe_flat.reshape(padded_rows, _LANES)

    n_blocks = padded_rows // tr
    spec = pl.BlockSpec((tr, _LANES), lambda i: (i, 0))

    use_dropout = bool(training) and float(p) > 0.0
    if use_dropout:
        if rng_key is None:
            rng_key = jax.random.PRNGKey(0)
        u2 = jax.random.uniform(rng_key, (padded_rows, _LANES), dtype=jnp.float32)
        kernel = functools.partial(_posenc_add_dropout_kernel, p=float(p))
        operands = (x2, pe2, u2)
        in_specs = [spec, spec, spec]
    else:
        kernel = _posenc_add_kernel
        operands = (x2, pe2)
        in_specs = [spec, spec]

    out2 = pl.pallas_call(
        kernel,
        out_shape=jax.ShapeDtypeStruct((padded_rows, _LANES), x.dtype),
        grid=(n_blocks,),
        in_specs=in_specs,
        out_specs=spec,
        compiler_params=pltpu.CompilerParams(dimension_semantics=("parallel",)),
    )(*operands)

    return out2.reshape(-1)[:total].reshape(S, B, D)


# ----------------------------------------------------------------------------
# Main
# ----------------------------------------------------------------------------
if __name__ == "__main__":
    # ---- Small shapes consistent with the module: seq=8, batch=2, d_model=32
    SEQ, BATCH, D_MODEL = 8, 2, 32
    MAX_SEQ_LEN = 64  # small synthetic max_seq_len (module default is 5000)

    key = jax.random.PRNGKey(0)
    k_x, k_xbig, k_drop = jax.random.split(key, 3)

    x = jax.random.normal(k_x, (SEQ, BATCH, D_MODEL), dtype=jnp.float32)
    pe = make_positional_encoding_table(MAX_SEQ_LEN, D_MODEL)
    ref = np.asarray(x) + np.asarray(pe[:SEQ])

    # Eval-mode forward (dropout = identity): must match x + pe[:S].
    y_eval = jax.block_until_ready(
        positional_encoding_forward(x, pe, p=0.1, training=False))
    np.testing.assert_allclose(np.asarray(y_eval), ref, rtol=1e-6, atol=1e-6)

    # Train-mode forward (fused inverted dropout): elements are 0 or (x+pe)/(1-p).
    y_train = jax.block_until_ready(
        positional_encoding_forward(x, pe, p=0.1, training=True, rng_key=k_drop))
    yt = np.asarray(y_train)
    nz = yt != 0.0
    np.testing.assert_allclose(yt[nz], (ref / (1.0 - 0.1))[nz], rtol=1e-5, atol=1e-5)

    # ---- Larger run to exercise the multi-block pipelined / megacore path.
    S2, B2, D2 = 128, 4, 512                      # 2048 rows -> 2 grid steps
    pe_big = make_positional_encoding_table(256, D2)
    x_big = jax.random.normal(k_xbig, (S2, B2, D2), dtype=jnp.float32)
    y_big = jax.block_until_ready(
        positional_encoding_forward(x_big, pe_big, p=0.1, training=False))
    ref_big = np.asarray(x_big) + np.asarray(pe_big[:S2])
    np.testing.assert_allclose(np.asarray(y_big), ref_big, rtol=1e-6, atol=1e-6)

    print("KERNEL_OK")
</pallas_src>

<mosaic_0001>
module attributes {stable_mosaic.version = 11 : i64} {
  func.func @_posenc_add_kernel(%arg0: i32, %arg1: memref<8x128xf32, #tpu.memory_space<vmem>>, %arg2: memref<8x128xf32, #tpu.memory_space<vmem>>, %arg3: memref<8x128xf32, #tpu.memory_space<vmem>>) attributes {dimension_semantics = [#tpu.dimension_semantics<parallel>], iteration_bounds = array<i64: 1>, scalar_prefetch = 0 : i64, scratch_operands = 0 : i64, tpu.core_type = #tpu.core_type<tc>, window_params = [{transform_indices = @transform_0, window_bounds = array<i64: 8, 128>}, {transform_indices = @transform_1, window_bounds = array<i64: 8, 128>}, {transform_indices = @transform_2, window_bounds = array<i64: 8, 128>}]} {
    %c0 = arith.constant 0 : index
    %c0_0 = arith.constant 0 : index
    %0 = vector.load %arg1[%c0, %c0_0] : memref<8x128xf32, #tpu.memory_space<vmem>>, vector<8x128xf32>
    %c0_1 = arith.constant 0 : index
    %c0_2 = arith.constant 0 : index
    %1 = vector.load %arg2[%c0_1, %c0_2] : memref<8x128xf32, #tpu.memory_space<vmem>>, vector<8x128xf32>
    %2 = arith.addf %0, %1 : vector<8x128xf32>
    %c0_3 = arith.constant 0 : index
    %c0_4 = arith.constant 0 : index
    %3 = vector.load %arg3[%c0_3, %c0_4] : memref<8x128xf32, #tpu.memory_space<vmem>>, vector<8x128xf32>
    tpu.vector_store %arg3[%c0_3, %c0_4], %2 {strides = array<i32>} : memref<8x128xf32, #tpu.memory_space<vmem>>, vector<8x128xf32>,
    return
  }
  func.func @transform_0(%arg0: i32) -> (i32, i32) {
    %c0_i32 = arith.constant 0 : i32
    %c0_i32_0 = arith.constant 0 : i32
    return %arg0, %c0_i32 : i32, i32
  }
  func.func @transform_1(%arg0: i32) -> (i32, i32) {
    %c0_i32 = arith.constant 0 : i32
    %c0_i32_0 = arith.constant 0 : i32
    return %arg0, %c0_i32 : i32, i32
  }
  func.func @transform_2(%arg0: i32) -> (i32, i32) {
    %c0_i32 = arith.constant 0 : i32
    %c0_i32_0 = arith.constant 0 : i32
    return %arg0, %c0_i32 : i32, i32
  }
}

</mosaic_0001>

<llo_original>
// kernel: tpu_custom_call.1
$region0: #{tpu_custom_call.1}
  #allocation0 [shape = 'u32[]', space=smem, size = 0x4, offset = 0x4, fixed_abs, tag = 'smem constant byte address 0x4 - core index']
  #allocation1 [shape = 'u32[72,128]{1,0:T(1,128)}', space=vmem, size = 0x9000, scoped, tag = 'internal scratch']
  %s0 = inlined_call_operand.hbm [shape: f32[8,128], index: 0, kind: input, shape index: {}]
  %s1 = inlined_call_operand.hbm [shape: f32[8,128], index: 1, kind: input, shape index: {}]
  %s2 = inlined_call_operand.hbm [shape: f32[8,128], index: 2, kind: output, shape index: {}]
  %s3 = sld [smem:[#allocation0]]
  $region26: #{tpu_custom_call.1} parent=0
    _
  %s5 = ssub.s32 1, %s3
  %s6 = scalar_select 0, %s5, %s3
  $region1: #{tpu_custom_call.1} parent=0
    #allocation2 [shape = 'u8[4096]{0}', space=vmem, size = 0x1000, scoped, tag = 'input window, operand 0, single buffered']
    #allocation3 [shape = 's32[1]{0}', space=sflag, size = 0x4, scoped, tag = 'scoped memory for tpu_custom_call.1']
    #allocation4 [shape = 's32[1]{0}', space=sflag, size = 0x4, scoped, tag = 'scoped memory for tpu_custom_call.1']
    #allocation5 [shape = 'u8[4096]{0}', space=vmem, size = 0x1000, scoped, tag = 'input window, operand 1, single buffered']
    #allocation6 [shape = 's32[1]{0}', space=sflag, size = 0x4, scoped, tag = 'scoped memory for tpu_custom_call.1']
    #allocation7 [shape = 'u8[4096]{0}', space=vmem, size = 0x1000, scoped, tag = 'output window, operand 0, single buffered']
    %7 = vsyncpa [#allocation3], 0
    %8 = vsyncpa [#allocation6], 0
    %9 = vsyncpa [#allocation4], 0
    // Predicated region
    $region2: #{tpu_custom_call.1} parent=1 // pred_check
      _
    $region3: #{tpu_custom_call.1} parent=1 // pred_check_branch
      %11 = sbr.rel (0) target = $region5
    $region4: #{tpu_custom_call.1} parent=1 // pred_region
      %13 = vsyncadd [#allocation3], 0
      %s15 = sshll.u32 %s0, 4
      %s16 = int_to_ptr.hbm [resolvable:$true] %s15
      %s17 = sshll.u32 [#allocation2], 4
      %s18 = int_to_ptr.vmem [resolvable:$true] %s17
      %20 = dma.hbm_to_vmem [thread:$0]  %s16, 128, %s18, [#allocation3]
    $region5: #{tpu_custom_call.1} parent=1 // pred_fallthru
      _
    // Predicated region
    $region6: #{tpu_custom_call.1} parent=1 // pred_check
      _
    $region7: #{tpu_custom_call.1} parent=1 // pred_check_branch
      %22 = sbr.rel (0) target = $region9
    $region8: #{tpu_custom_call.1} parent=1 // pred_region
      %24 = vsyncadd [#allocation6], 0
      %s26 = sshll.u32 %s1, 4
      %s27 = int_to_ptr.hbm [resolvable:$true] %s26
      %s28 = sshll.u32 [#allocation5], 4
      %s29 = int_to_ptr.vmem [resolvable:$true] %s28
      %31 = dma.hbm_to_vmem [thread:$0]  %s27, 128, %s29, [#allocation6]
    $region9: #{tpu_custom_call.1} parent=1 // pred_fallthru
      _
    // Predicated region
    $region10: #{tpu_custom_call.1} parent=1 // pred_check
      _
    $region11: #{tpu_custom_call.1} parent=1 // pred_check_branch
      %33 = sbr.rel (0) target = $region13
    $region12: #{tpu_custom_call.1} parent=1 // pred_region
      %35 = dma.done [#allocation3], 128
    $region13: #{tpu_custom_call.1} parent=1 // pred_fallthru
      _
    // Predicated region
    $region14: #{tpu_custom_call.1} parent=1 // pred_check
      _
    $region15: #{tpu_custom_call.1} parent=1 // pred_check_branch
      %37 = sbr.rel (0) target = $region17
    $region16: #{tpu_custom_call.1} parent=1 // pred_region
      %39 = dma.done [#allocation6], 128
    $region17: #{tpu_custom_call.1} parent=1 // pred_fallthru
      _
    %v40 = vld [vmem:[#allocation2] sm:$0xff]
    %v41 = vld [vmem:[#allocation5] sm:$0xff]
    %v42 = vadd.f32 %v40, %v41
    %43 = vst [vmem:[#allocation7] sm:$0xff] %v42
    // Predicated region
    $region18: #{tpu_custom_call.1} parent=1 // pred_check
      _
    $region19: #{tpu_custom_call.1} parent=1 // pred_check_branch
      %45 = sbr.rel (0) target = $region21
    $region20: #{tpu_custom_call.1} parent=1 // pred_region
      %47 = vsyncadd [#allocation4], 0
      %s49 = sshll.u32 [#allocation7], 4
      %s50 = int_to_ptr.vmem [resolvable:$true] %s49
      %s51 = sshll.u32 %s2, 4
      %s52 = int_to_ptr.hbm [resolvable:$true] %s51
      %54 = dma.vmem_to_hbm [thread:$0]  %s50, 128, %s52, [#allocation4]
    $region21: #{tpu_custom_call.1} parent=1 // pred_fallthru
      _
    // Predicated region
    $region22: #{tpu_custom_call.1} parent=1 // pred_check
      _
    $region23: #{tpu_custom_call.1} parent=1 // pred_check_branch
      %56 = sbr.rel (0) target = $region25
    $region24: #{tpu_custom_call.1} parent=1 // pred_region
      %58 = dma.done [#allocation4], 128
    $region25: #{tpu_custom_call.1} parent=1 // pred_fallthru
      _
    %59 = vsyncpa [#allocation3], 1
    %60 = vsyncpa [#allocation6], 1
    %61 = vsyncpa [#allocation4], 1

</llo_original>
